<compile_context>
chip_gen: v5e
topology: v5e:2x2
jax: 0.10.0
libtpu: 0.0.40
codegen_flags: <defaults>
</compile_context>

<pallas_src>
import jax
import jax.numpy as jnp
from jax.experimental import pallas as pl
from jax.experimental.pallas import tpu as pltpu

ARIA_CAM_IDS = (0, 1, 2)
ARIA_CAM_NAMES = ("rgb", "slaml", "slamr")

IOU_THRS = jnp.arange(0.5, 1.0, 0.05, dtype=jnp.float32)   # 10 COCO thresholds
REC_THRS = jnp.linspace(0.0, 1.0, 101, dtype=jnp.float32)  # 101-pt interpolation


# ----------------------------------------------------------------------------
# Pallas kernel: class- and validity-masked pairwise IoU, one camera per grid
# step (grid axis is "parallel" -> megacore sharding on v7x).
# ----------------------------------------------------------------------------
def _pairwise_iou_kernel(pred_ref, tgt_t_ref, plab_ref, tlab_ref, out_ref):
    # pred_ref : [N, 4] xyxy f32    plab_ref : [N, 1] int32
    # tgt_t_ref: [4, M] xyxy^T f32  tlab_ref : [1, M] int32
    # out_ref  : [N, M] IoU, zeroed where labels differ or either side invalid
    px1 = pred_ref[:, 0:1]
    py1 = pred_ref[:, 1:2]
    px2 = pred_ref[:, 2:3]
    py2 = pred_ref[:, 3:4]

    tx1 = tgt_t_ref[0:1, :]
    ty1 = tgt_t_ref[1:2, :]
    tx2 = tgt_t_ref[2:3, :]
    ty2 = tgt_t_ref[3:4, :]

    ix1 = jnp.maximum(px1, tx1)
    iy1 = jnp.maximum(py1, ty1)
    ix2 = jnp.minimum(px2, tx2)
    iy2 = jnp.minimum(py2, ty2)

    iw = jnp.maximum(ix2 - ix1, 0.0)
    ih = jnp.maximum(iy2 - iy1, 0.0)
    inter = iw * ih

    area_p = jnp.maximum(px2 - px1, 0.0) * jnp.maximum(py2 - py1, 0.0)
    area_t = jnp.maximum(tx2 - tx1, 0.0) * jnp.maximum(ty2 - ty1, 0.0)
    union = jnp.maximum(area_p + area_t - inter, 1e-9)

    # EUP reciprocal frees VALU issue slots (use approx=False for bit-exact IoU).
    iou = inter * pl.reciprocal(union, approx=True)

    plab = plab_ref[...]                                   # [N, 1] int32
    tlab = tlab_ref[...]                                   # [1, M] int32
    mask = (plab == tlab) & (plab >= 0) & (tlab >= 0)      # -> [N, M] bool
    out_ref[...] = jnp.where(mask, iou, 0.0)


# ----------------------------------------------------------------------------
# JAX glue: greedy matching + average precision (torchmetrics-style mAP core).
# IoU is already class/validity masked, so only 'matched' masking is needed.
# ----------------------------------------------------------------------------
def average_precision(iou, scores, pred_valid, n_gt):
    """iou [N,M] masked; scores/pred_valid [N]; n_gt scalar. Returns AP [T]."""
    n, m = iou.shape
    t = IOU_THRS.shape[0]

    order = jnp.argsort(-scores)                 # sort predictions by score desc
    iou_sorted = iou[order]                      # [N, M]
    valid_sorted = pred_valid[order]             # [N]

    def body(k, carry):
        matched, tp = carry                      # matched [T,M] bool, tp [T,N] bool
        row = iou_sorted[k]                      # [M]
        avail = jnp.where(matched, -1.0, row[None, :])     # [T, M]
        best_iou = jnp.max(avail, axis=1)        # [T]
        best_idx = jnp.argmax(avail, axis=1)     # [T]
        is_tp = (best_iou >= IOU_THRS) & valid_sorted[k]
        matched = matched | (
            is_tp[:, None] & (jnp.arange(m)[None, :] == best_idx[:, None])
        )
        tp = tp.at[:, k].set(is_tp)
        return matched, tp

    matched0 = jnp.zeros((t, m), dtype=bool)
    tp0 = jnp.zeros((t, n), dtype=bool)
    _, tp = jax.lax.fori_loop(0, n, body, (matched0, tp0))

    n_gt = jnp.maximum(n_gt, 1.0)
    tp_cum = jnp.cumsum(tp.astype(jnp.float32), axis=1)
    fp_cum = jnp.cumsum((valid_sorted[None, :] & ~tp).astype(jnp.float32), axis=1)
    recall = tp_cum / n_gt
    precision = tp_cum / jnp.maximum(tp_cum + fp_cum, 1e-9)

    # 101-point interpolated AP: max precision over points with recall >= r.
    prec_at_rec = jnp.max(
        jnp.where(
            recall[:, None, :] >= REC_THRS[None, :, None],
            precision[:, None, :],
            0.0,
        ),
        axis=2,
    )                                            # [T, 101]
    return jnp.mean(prec_at_rec, axis=1)         # [T]


# ----------------------------------------------------------------------------
# Single jitted pipeline: one pallas_call (all cameras) + vmapped AP.
# ----------------------------------------------------------------------------
@jax.jit
def compute_map_2d(pred_bb2, pred_prob, pred_sem_id, tgt_bb2, tgt_sem_id):
    """pred_bb2 [C,N,4], pred_prob [N], pred_sem_id [N] int,
       tgt_bb2 [C,M,4], tgt_sem_id [M] int  ->  AP [C, T]."""
    c, n, _ = pred_bb2.shape
    m = tgt_bb2.shape[1]

    # Lane/sublane alignment invariants: N -> x8 (sublanes), M -> x128 (lanes,
    # keeps output stores unmasked / lane-dense). Pads are marked invalid.
    np_ = n + ((-n) % 8)
    mp_ = m + ((-m) % 128)

    pred_bb2 = jnp.pad(pred_bb2.astype(jnp.float32),
                       ((0, 0), (0, np_ - n), (0, 0)))
    tgt_bb2 = jnp.pad(tgt_bb2.astype(jnp.float32),
                      ((0, 0), (0, mp_ - m), (0, 0)))
    pred_sem_id = jnp.pad(pred_sem_id.astype(jnp.int32), ((0, np_ - n),),
                          constant_values=-1)
    tgt_sem_id = jnp.pad(tgt_sem_id.astype(jnp.int32), ((0, mp_ - m),),
                         constant_values=-1)
    pred_prob = jnp.pad(pred_prob.astype(jnp.float32), ((0, np_ - n),),
                        constant_values=-1.0)

    tgt_t = jnp.swapaxes(tgt_bb2, 1, 2)                    # [C, 4, Mp]
    plab = pred_sem_id.reshape(np_, 1)                     # [Np, 1] int32
    tlab = tgt_sem_id.reshape(1, mp_)                      # [1, Mp] int32

    iou = pl.pallas_call(
        _pairwise_iou_kernel,
        out_shape=jax.ShapeDtypeStruct((c, np_, mp_), jnp.float32),
        grid=(c,),
        in_specs=[
            pl.BlockSpec((None, np_, 4), lambda i: (i, 0, 0)),   # pred boxes
            pl.BlockSpec((None, 4, mp_), lambda i: (i, 0, 0)),   # tgt boxes^T
            pl.BlockSpec((np_, 1), lambda i: (0, 0)),            # pred labels
            pl.BlockSpec((1, mp_), lambda i: (0, 0)),            # tgt labels
        ],
        out_specs=pl.BlockSpec((None, np_, mp_), lambda i: (i, 0, 0)),
        compiler_params=pltpu.CompilerParams(
            dimension_semantics=("parallel",)),
    )(pred_bb2, tgt_t, plab, tlab)                         # [C, Np, Mp]
    # TODO(synk): if N/M grow to thousands, add a 2-D grid over (N, M) tiles
    # (e.g. 256x512) instead of full-array blocks to respect v7x's 64 MiB VMEM.

    pred_valid = pred_sem_id >= 0                          # [Np]
    n_gt = jnp.sum((tgt_sem_id >= 0).astype(jnp.float32))  # scalar

    ap = jax.vmap(average_precision, in_axes=(0, None, None, None))(
        iou, pred_prob, pred_valid, n_gt)                  # [C, T]
    return ap


# ----------------------------------------------------------------------------
# ObbMetrics equivalent.
# ----------------------------------------------------------------------------
class ObbMetricsPallas:
    """JAX/Pallas analogue of efm3d ObbMetrics (2D mAP per Aria camera)."""

    def __init__(self, cam_ids=ARIA_CAM_IDS, cam_names=ARIA_CAM_NAMES,
                 eval_2d=True, eval_3d=False):
        assert eval_2d or eval_3d
        self.cam_ids = cam_ids
        self.cam_names = cam_names
        self.eval_2d = eval_2d
        self.eval_3d = eval_3d
        # TODO(synk): eval_3d path (MeanAveragePrecision3D over 8-corner world
        # boxes, visibility filtering, volume-range breakdown) has no clean
        # Pallas equivalent here and is not implemented.

    def forward(self, pred_bb2, pred_prob, pred_sem_id, tgt_bb2, tgt_sem_id):
        # pred_bb2 [C,N,4], pred_prob [N], pred_sem_id [N]
        # tgt_bb2  [C,M,4], tgt_sem_id [M]
        metrics = {}
        if not self.eval_2d:
            return metrics
        ap = compute_map_2d(pred_bb2, pred_prob, pred_sem_id,
                            tgt_bb2, tgt_sem_id)            # [C, T]
        for cam_id, cam_name in zip(self.cam_ids, self.cam_names):
            # TODO(synk): torchmetrics also reports per-class map / mar_k /
            # area-range metrics, and averages per class (macro); only the
            # headline micro-averaged AP values are reproduced here.
            metrics[f"{cam_name}/map_2D"] = jnp.mean(ap[cam_id])
            metrics[f"{cam_name}/map_50_2D"] = ap[cam_id, 0]
            metrics[f"{cam_name}/map_75_2D"] = ap[cam_id, 5]
        return metrics

    __call__ = forward


# ----------------------------------------------------------------------------
def _make_boxes(key, n, extent=16.0):
    k1, k2, k3, k4 = jax.random.split(key, 4)
    x1 = jax.random.uniform(k1, (n,), minval=0.0, maxval=extent)
    y1 = jax.random.uniform(k2, (n,), minval=0.0, maxval=extent)
    w = jax.random.uniform(k3, (n,), minval=1.0, maxval=extent / 2)
    h = jax.random.uniform(k4, (n,), minval=1.0, maxval=extent / 2)
    return jnp.stack([x1, y1, x1 + w, y1 + h], axis=-1)  # [n, 4] xyxy


if __name__ == "__main__":
    key = jax.random.PRNGKey(0)
    C, N_PRED, N_TGT, N_CLASSES = 3, 60, 100, 4   # unaligned -> exercises padding

    keys = jax.random.split(key, 8)
    pred_bb2 = jnp.stack(
        [_make_boxes(jax.random.fold_in(keys[0], c), N_PRED) for c in range(C)]
    )                                                             # [C, 60, 4]
    tgt_bb2 = jnp.stack(
        [_make_boxes(jax.random.fold_in(keys[1], c), N_TGT) for c in range(C)]
    )                                                             # [C, 100, 4]

    pred_prob = jax.random.uniform(keys[2], (N_PRED,))
    pred_sem_id = jax.random.randint(keys[3], (N_PRED,), 0, N_CLASSES)
    tgt_sem_id = jax.random.randint(keys[4], (N_TGT,), 0, N_CLASSES)

    # Pad-style invalid entries (like ObbTW padding): never match anything.
    pred_sem_id = pred_sem_id.at[-8:].set(-1)
    tgt_sem_id = tgt_sem_id.at[-16:].set(-2)

    metric = ObbMetricsPallas()
    out = metric(pred_bb2, pred_prob, pred_sem_id, tgt_bb2, tgt_sem_id)
    out = jax.tree_util.tree_map(lambda x: jax.block_until_ready(x), out)

    print("KERNEL_OK")
</pallas_src>

<mosaic_0001>
module attributes {stable_mosaic.version = 11 : i64} {
  func.func @_pairwise_iou_kernel(%arg0: i32, %arg1: memref<1x64x4xf32, #tpu.memory_space<vmem>>, %arg2: memref<1x4x128xf32, #tpu.memory_space<vmem>>, %arg3: memref<64x1xi32, #tpu.memory_space<vmem>>, %arg4: memref<1x128xi32, #tpu.memory_space<vmem>>, %arg5: memref<1x64x128xf32, #tpu.memory_space<vmem>>) attributes {dimension_semantics = [#tpu.dimension_semantics<parallel>], iteration_bounds = array<i64: 3>, scalar_prefetch = 0 : i64, scratch_operands = 0 : i64, tpu.core_type = #tpu.core_type<tc>, window_params = [{transform_indices = @transform_0, window_bounds = array<i64: 1, 64, 4>}, {transform_indices = @transform_1, window_bounds = array<i64: 1, 4, 128>}, {pipeline_mode = #tpu.pipeline_mode<synchronous>, transform_indices = @transform_2, window_bounds = array<i64: 64, 1>}, {pipeline_mode = #tpu.pipeline_mode<synchronous>, transform_indices = @transform_3, window_bounds = array<i64: 1, 128>}, {transform_indices = @transform_4, window_bounds = array<i64: 1, 64, 128>}]} {
    %c0 = arith.constant 0 : index
    %c0_0 = arith.constant 0 : index
    %c0_1 = arith.constant 0 : index
    %0 = vector.load %arg1[%c0, %c0_0, %c0_1] : memref<1x64x4xf32, #tpu.memory_space<vmem>>, vector<1x64x1xf32>
    %1 = vector.shape_cast %0 : vector<1x64x1xf32> to vector<64x1xf32>
    %c0_2 = arith.constant 0 : index
    %c0_3 = arith.constant 0 : index
    %c1 = arith.constant 1 : index
    %2 = vector.load %arg1[%c0_2, %c0_3, %c1] : memref<1x64x4xf32, #tpu.memory_space<vmem>>, vector<1x64x1xf32>
    %3 = vector.shape_cast %2 : vector<1x64x1xf32> to vector<64x1xf32>
    %c0_4 = arith.constant 0 : index
    %c0_5 = arith.constant 0 : index
    %c2 = arith.constant 2 : index
    %4 = vector.load %arg1[%c0_4, %c0_5, %c2] : memref<1x64x4xf32, #tpu.memory_space<vmem>>, vector<1x64x1xf32>
    %5 = vector.shape_cast %4 : vector<1x64x1xf32> to vector<64x1xf32>
    %c0_6 = arith.constant 0 : index
    %c0_7 = arith.constant 0 : index
    %c3 = arith.constant 3 : index
    %6 = vector.load %arg1[%c0_6, %c0_7, %c3] : memref<1x64x4xf32, #tpu.memory_space<vmem>>, vector<1x64x1xf32>
    %7 = vector.shape_cast %6 : vector<1x64x1xf32> to vector<64x1xf32>
    %c0_8 = arith.constant 0 : index
    %c0_9 = arith.constant 0 : index
    %c0_10 = arith.constant 0 : index
    %8 = vector.load %arg2[%c0_8, %c0_9, %c0_10] : memref<1x4x128xf32, #tpu.memory_space<vmem>>, vector<1x1x128xf32>
    %9 = vector.shape_cast %8 : vector<1x1x128xf32> to vector<1x128xf32>
    %c0_11 = arith.constant 0 : index
    %c1_12 = arith.constant 1 : index
    %c0_13 = arith.constant 0 : index
    %10 = vector.load %arg2[%c0_11, %c1_12, %c0_13] : memref<1x4x128xf32, #tpu.memory_space<vmem>>, vector<1x1x128xf32>
    %11 = vector.shape_cast %10 : vector<1x1x128xf32> to vector<1x128xf32>
    %c0_14 = arith.constant 0 : index
    %c2_15 = arith.constant 2 : index
    %c0_16 = arith.constant 0 : index
    %12 = vector.load %arg2[%c0_14, %c2_15, %c0_16] : memref<1x4x128xf32, #tpu.memory_space<vmem>>, vector<1x1x128xf32>
    %13 = vector.shape_cast %12 : vector<1x1x128xf32> to vector<1x128xf32>
    %c0_17 = arith.constant 0 : index
    %c3_18 = arith.constant 3 : index
    %c0_19 = arith.constant 0 : index
    %14 = vector.load %arg2[%c0_17, %c3_18, %c0_19] : memref<1x4x128xf32, #tpu.memory_space<vmem>>, vector<1x1x128xf32>
    %15 = vector.shape_cast %14 : vector<1x1x128xf32> to vector<1x128xf32>
    %16 = vector.broadcast %1 : vector<64x1xf32> to vector<64x128xf32>
    %17 = vector.broadcast %9 : vector<1x128xf32> to vector<64x128xf32>
    %18 = arith.maximumf %16, %17 : vector<64x128xf32>
    %19 = vector.broadcast %3 : vector<64x1xf32> to vector<64x128xf32>
    %20 = vector.broadcast %11 : vector<1x128xf32> to vector<64x128xf32>
    %21 = arith.maximumf %19, %20 : vector<64x128xf32>
    %22 = vector.broadcast %5 : vector<64x1xf32> to vector<64x128xf32>
    %23 = vector.broadcast %13 : vector<1x128xf32> to vector<64x128xf32>
    %24 = arith.minimumf %22, %23 : vector<64x128xf32>
    %25 = vector.broadcast %7 : vector<64x1xf32> to vector<64x128xf32>
    %26 = vector.broadcast %15 : vector<1x128xf32> to vector<64x128xf32>
    %27 = arith.minimumf %25, %26 : vector<64x128xf32>
    %28 = arith.subf %24, %18 : vector<64x128xf32>
    %cst = arith.constant 0.000000e+00 : f32
    %29 = vector.broadcast %cst : f32 to vector<64x128xf32>
    %30 = arith.maximumf %28, %29 : vector<64x128xf32>
    %31 = arith.subf %27, %21 : vector<64x128xf32>
    %cst_20 = arith.constant 0.000000e+00 : f32
    %32 = vector.broadcast %cst_20 : f32 to vector<64x128xf32>
    %33 = arith.maximumf %31, %32 : vector<64x128xf32>
    %34 = arith.mulf %30, %33 : vector<64x128xf32>
    %35 = arith.subf %5, %1 : vector<64x1xf32>
    %cst_21 = arith.constant 0.000000e+00 : f32
    %36 = vector.broadcast %cst_21 : f32 to vector<64x1xf32>
    %37 = arith.maximumf %35, %36 : vector<64x1xf32>
    %38 = arith.subf %7, %3 : vector<64x1xf32>
    %cst_22 = arith.constant 0.000000e+00 : f32
    %39 = vector.broadcast %cst_22 : f32 to vector<64x1xf32>
    %40 = arith.maximumf %38, %39 : vector<64x1xf32>
    %41 = arith.mulf %37, %40 : vector<64x1xf32>
    %42 = arith.subf %13, %9 : vector<1x128xf32>
    %cst_23 = arith.constant 0.000000e+00 : f32
    %43 = vector.broadcast %cst_23 : f32 to vector<1x128xf32>
    %44 = arith.maximumf %42, %43 : vector<1x128xf32>
    %45 = arith.subf %15, %11 : vector<1x128xf32>
    %cst_24 = arith.constant 0.000000e+00 : f32
    %46 = vector.broadcast %cst_24 : f32 to vector<1x128xf32>
    %47 = arith.maximumf %45, %46 : vector<1x128xf32>
    %48 = arith.mulf %44, %47 : vector<1x128xf32>
    %49 = vector.broadcast %41 : vector<64x1xf32> to vector<64x128xf32>
    %50 = vector.broadcast %48 : vector<1x128xf32> to vector<64x128xf32>
    %51 = arith.addf %49, %50 : vector<64x128xf32>
    %52 = arith.subf %51, %34 : vector<64x128xf32>
    %cst_25 = arith.constant 9.99999971E-10 : f32
    %53 = vector.broadcast %cst_25 : f32 to vector<64x128xf32>
    %54 = arith.maximumf %52, %53 : vector<64x128xf32>
    %55 = tpu.reciprocal %54 {approx = true} : vector<64x128xf32> -> vector<64x128xf32>
    %56 = arith.mulf %34, %55 : vector<64x128xf32>
    %c0_26 = arith.constant 0 : index
    %c0_27 = arith.constant 0 : index
    %57 = vector.load %arg3[%c0_26, %c0_27] : memref<64x1xi32, #tpu.memory_space<vmem>>, vector<64x1xi32>
    %c0_28 = arith.constant 0 : index
    %c0_29 = arith.constant 0 : index
    %58 = vector.load %arg4[%c0_28, %c0_29] : memref<1x128xi32, #tpu.memory_space<vmem>>, vector<1x128xi32>
    %59 = vector.broadcast %57 : vector<64x1xi32> to vector<64x128xi32>
    %60 = vector.broadcast %58 : vector<1x128xi32> to vector<64x128xi32>
    %61 = arith.cmpi eq, %59, %60 : vector<64x128xi32>
    %c0_i32 = arith.constant 0 : i32
    %62 = vector.broadcast %c0_i32 : i32 to vector<64x1xi32>
    %63 = arith.cmpi sge, %57, %62 : vector<64x1xi32>
    %64 = vector.broadcast %63 : vector<64x1xi1> to vector<64x128xi1>
    %65 = arith.andi %61, %64 : vector<64x128xi1>
    %c0_i32_30 = arith.constant 0 : i32
    %66 = vector.broadcast %c0_i32_30 : i32 to vector<1x128xi32>
    %67 = arith.cmpi sge, %58, %66 : vector<1x128xi32>
    %68 = vector.broadcast %67 : vector<1x128xi1> to vector<64x128xi1>
    %69 = arith.andi %65, %68 : vector<64x128xi1>
    %cst_31 = arith.constant 0.000000e+00 : f32
    %70 = vector.broadcast %cst_31 : f32 to vector<64x128xf32>
    %71 = arith.select %69, %56, %70 : vector<64x128xi1>, vector<64x128xf32>
    %c0_32 = arith.constant 0 : index
    %c0_33 = arith.constant 0 : index
    %c0_34 = arith.constant 0 : index
    %72 = vector.load %arg5[%c0_32, %c0_33, %c0_34] : memref<1x64x128xf32, #tpu.memory_space<vmem>>, vector<1x64x128xf32>
    %73 = vector.shape_cast %72 : vector<1x64x128xf32> to vector<64x128xf32>
    %74 = vector.shape_cast %71 : vector<64x128xf32> to vector<1x64x128xf32>
    tpu.vector_store %arg5[%c0_32, %c0_33, %c0_34], %74 {strides = array<i32>} : memref<1x64x128xf32, #tpu.memory_space<vmem>>, vector<1x64x128xf32>,
    return
  }
  func.func @transform_0(%arg0: i32) -> (i32, i32, i32) {
    %c0_i32 = arith.constant 0 : i32
    %c0_i32_0 = arith.constant 0 : i32
    %c0_i32_1 = arith.constant 0 : i32
    return %arg0, %c0_i32, %c0_i32_0 : i32, i32, i32
  }
  func.func @transform_1(%arg0: i32) -> (i32, i32, i32) {
    %c0_i32 = arith.constant 0 : i32
    %c0_i32_0 = arith.constant 0 : i32
    %c0_i32_1 = arith.constant 0 : i32
    return %arg0, %c0_i32, %c0_i32_0 : i32, i32, i32
  }
  func.func @transform_2(%arg0: i32) -> (i32, i32) {
    %c0_i32 = arith.constant 0 : i32
    %c0_i32_0 = arith.constant 0 : i32
    %c0_i32_1 = arith.constant 0 : i32
    return %c0_i32, %c0_i32_0 : i32, i32
  }
  func.func @transform_3(%arg0: i32) -> (i32, i32) {
    %c0_i32 = arith.constant 0 : i32
    %c0_i32_0 = arith.constant 0 : i32
    %c0_i32_1 = arith.constant 0 : i32
    return %c0_i32, %c0_i32_0 : i32, i32
  }
  func.func @transform_4(%arg0: i32) -> (i32, i32, i32) {
    %c0_i32 = arith.constant 0 : i32
    %c0_i32_0 = arith.constant 0 : i32
    %c0_i32_1 = arith.constant 0 : i32
    return %arg0, %c0_i32, %c0_i32_0 : i32, i32, i32
  }
}

</mosaic_0001>

<llo_original>
// kernel: custom-call
$region0: #{custom-call}
  %s0 = inlined_call_operand.vmem [shape: pred[3,10,128], index: 0, kind: output, shape index: {}]

// kernel: compute_map_2d.1
$region0: #{compute_map_2d.1}
  #allocation0 [shape = 'u32[]', space=smem, size = 0x4, offset = 0x4, fixed_abs, tag = 'smem constant byte address 0x4 - core index']
  #allocation1 [shape = 'u32[72,128]{1,0:T(1,128)}', space=vmem, size = 0x9000, scoped, tag = 'internal scratch']
  %s0 = inlined_call_operand.vmem [shape: f32[3,64,4], index: 0, kind: input, shape index: {}]
  %s1 = inlined_call_operand.vmem [shape: f32[3,4,128], index: 1, kind: input, shape index: {}]
  %s2 = inlined_call_operand.vmem [shape: s32[64,1], index: 2, kind: input, shape index: {}]
  %s3 = inlined_call_operand.vmem [shape: s32[1,128], index: 3, kind: input, shape index: {}]
  %s4 = inlined_call_operand.vmem [shape: f32[3,64,128], index: 4, kind: output, shape index: {}]
  %s5 = sld [smem:[#allocation0]]
  $region49: #{compute_map_2d.1} parent=0
    _
  %s7 = ssub.s32 1, %s5
  %s8 = scalar_select 0, %s7, %s5
  loop: start=0, step=1, limit=5
  $region2: #{compute_map_2d.1} parent=0 // loop_pre_header
    _
  $region3: #{compute_map_2d.1} parent=0 // loop_header
    %s10 = sphi 0, %s14
    %p11 = scmp.ge.s32.totalorder %s10, 5
    %s20 = sphi 0, %s22
    %s23 = sphi 0, %s20
    %s24 = sphi 0, %s23
    %s40 = sphi 0, %s24
    %s46 = sphi 0, %s48
    %s49 = sphi 0, %s46
    %s50 = sphi 0, %s49
    %s66 = sphi 0, %s50
    %s70 = sphi 0, %s70
    %s72 = sphi 0, %s70
    %s73 = sphi 0, %s72
    %s87 = sphi 0, %s73
    %s91 = sphi 0, %s91
    %s93 = sphi 0, %s91
    %s94 = sphi 0, %s93
    %s108 = sphi 0, %s94
    %s114 = sphi 0, %s116
    %s117 = sphi 0, %s114
    %s118 = sphi 0, %s117
    %s134 = sphi 0, %s118
  $region4: #{compute_map_2d.1} parent=0 // loop_header_branch
    %13 = sbr.rel (%p11) target = $region8
  $region5: #{compute_map_2d.1} parent=0 // loop_body
    %s15 = ssub.s32 %s10, 1
    %s16 = ssub.s32 %s10, 2
    %s17 = sadd.s32 %s10, 1
    %s18 = ssub.s32 %s10, %s17
    %p19 = scmp.eq.s32.totalorder %s18, 0
    %s21 = sadd.s32 %s20, 1
    %s22 = scalar_select %p19, %s20, %s21
    %p25 = pneg %p19
    %p26 = scmp.eq.s32.totalorder %s10, 2
    %p27 = por %p25, %p26
    %p28 = scmp.ne.s32.totalorder %s20, %s23
    %p29 = scmp.eq.s32.totalorder %s10, 0
    %p30 = por %p28, %p29
    %p31 = scmp.ne.s32.totalorder %s20, %s23
    %p32 = scmp.eq.s32.totalorder %s15, 2
    %p33 = por %p31, %p32
    %p34 = scmp.ne.s32.totalorder %s23, %s24
    %p35 = scmp.eq.s32.totalorder %s15, 0
    %p36 = por %p34, %p35
    %p37 = scmp.ne.s32.totalorder %s23, %s24
    %p38 = scmp.eq.s32.totalorder %s16, 2
    %p39 = por %p37, %p38
    %p41 = scmp.ne.s32.totalorder %s24, %s40
    %p42 = scmp.eq.s32.totalorder %s16, 0
    %p43 = por %p41, %p42
    %s44 = ssub.s32 %s10, %s17
    %p45 = scmp.eq.s32.totalorder %s44, 0
    %s47 = sadd.s32 %s46, 1
    %s48 = scalar_select %p45, %s46, %s47
    %p51 = pneg %p45
    %p52 = scmp.eq.s32.totalorder %s10, 2
    %p53 = por %p51, %p52
    %p54 = scmp.ne.s32.totalorder %s46, %s49
    %p55 = scmp.eq.s32.totalorder %s10, 0
    %p56 = por %p54, %p55
    %p57 = scmp.ne.s32.totalorder %s46, %s49
    %p58 = scmp.eq.s32.totalorder %s15, 2
    %p59 = por %p57, %p58
    %p60 = scmp.ne.s32.totalorder %s49, %s50
    %p61 = scmp.eq.s32.totalorder %s15, 0
    %p62 = por %p60, %p61
    %p63 = scmp.ne.s32.totalorder %s49, %s50
    %p64 = scmp.eq.s32.totalorder %s16, 2
    %p65 = por %p63, %p64
    %p67 = scmp.ne.s32.totalorder %s50, %s66
    %p68 = scmp.eq.s32.totalorder %s16, 0
    %p69 = por %p67, %p68
    %s71 = sadd.s32 %s70, 1
    %p74 = scmp.eq.s32.totalorder %s10, 2
    %p75 = scmp.ne.s32.totalorder %s70, %s72
    %p76 = scmp.eq.s32.totalorder %s10, 0
    %p77 = por %p75, %p76
    %p78 = scmp.ne.s32.totalorder %s70, %s72
    %p79 = scmp.eq.s32.totalorder %s15, 2
    %p80 = por %p78, %p79
    %p81 = scmp.ne.s32.totalorder %s72, %s73
    %p82 = scmp.eq.s32.totalorder %s15, 0
    %p83 = por %p81, %p82
    %p84 = scmp.ne.s32.totalorder %s72, %s73
    %p85 = scmp.eq.s32.totalorder %s16, 2
    %p86 = por %p84, %p85
    %p88 = scmp.ne.s32.totalorder %s73, %s87
    %p89 = scmp.eq.s32.totalorder %s16, 0
    %p90 = por %p88, %p89
    %s92 = sadd.s32 %s91, 1
    %p95 = scmp.eq.s32.totalorder %s10, 2
    %p96 = scmp.ne.s32.totalorder %s91, %s93
    %p97 = scmp.eq.s32.totalorder %s10, 0
    %p98 = por %p96, %p97
    %p99 = scmp.ne.s32.totalorder %s91, %s93
    %p100 = scmp.eq.s32.totalorder %s15, 2
    %p101 = por %p99, %p100
    %p102 = scmp.ne.s32.totalorder %s93, %s94
    %p103 = scmp.eq.s32.totalorder %s15, 0
    %p104 = por %p102, %p103
    %p105 = scmp.ne.s32.totalorder %s93, %s94
    %p106 = scmp.eq.s32.totalorder %s16, 2
    %p107 = por %p105, %p106
    %p109 = scmp.ne.s32.totalorder %s94, %s108
    %p110 = scmp.eq.s32.totalorder %s16, 0
    %p111 = por %p109, %p110
    %s112 = ssub.s32 %s10, %s17
    %p113 = scmp.eq.s32.totalorder %s112, 0
    %s115 = sadd.s32 %s114, 1
    %s116 = scalar_select %p113, %s114, %s115
    %p119 = pneg %p113
    %p120 = scmp.eq.s32.totalorder %s10, 2
    %p121 = por %p119, %p120
    %p122 = scmp.ne.s32.totalorder %s114, %s117
    %p123 = scmp.eq.s32.totalorder %s10, 0
    %p124 = por %p122, %p123
    %p125 = scmp.ne.s32.totalorder %s114, %s117
    %p126 = scmp.eq.s32.totalorder %s15, 2
    %p127 = por %p125, %p126
    %p128 = scmp.ne.s32.totalorder %s117, %s118
    %p129 = scmp.eq.s32.totalorder %s15, 0
    %p130 = por %p128, %p129
    %p131 = scmp.ne.s32.totalorder %s117, %s118
    %p132 = scmp.eq.s32.totalorder %s16, 2
    %p133 = por %p131, %p132
    %p135 = scmp.ne.s32.totalorder %s118, %s134
    %p136 = scmp.eq.s32.totalorder %s16, 0
    %p137 = por %p135, %p136
    %p138 = scmp.le.s32.totalorder 1, %s10
    %p139 = scmp.lt.s32.totalorder %s10, 4
    %p140 = pnand %p138, %p139
    %p141 = pneg %p140
    // Predicated region
    $region9: #{compute_map_2d.1} parent=5 // pred_check
      _
    $region10: #{compute_map_2d.1} parent=5 // pred_check_branch
      %143 = sbr.rel (%p140) target = $region12
    $region11: #{compute_map_2d.1} parent=5 // pred_region
      %s144 = ssub.s32 %s10, 1
      // Predicated region
      $region13: #{compute_map_2d.1} parent=11 // pred_check
        %p145 = pneg %p83
      $region14: #{compute_map_2d.1} parent=11 // pred_check_branch
        %147 = sbr.rel (%p145) target = $region16
      $region15: #{compute_map_2d.1} parent=11 // pred_region
        _
      $region16: #{compute_map_2d.1} parent=11 // pred_fallthru
        _
      // Predicated region
      $region17: #{compute_map_2d.1} parent=11 // pred_check
        %p148 = pneg %p104
      $region18: #{compute_map_2d.1} parent=11 // pred_check_branch
        %150 = sbr.rel (%p148) target = $region20
      $region19: #{compute_map_2d.1} parent=11 // pred_region
        _
      $region20: #{compute_map_2d.1} parent=11 // pred_fallthru
        _
    $region12: #{compute_map_2d.1} parent=5 // pred_fallthru
      _
    %p151 = scmp.lt.s32.totalorder %s10, 3
    // Predicated region
    $region21: #{compute_map_2d.1} parent=5 // pred_check
      %p152 = pneg %p151
    $region22: #{compute_map_2d.1} parent=5 // pred_check_branch
      %154 = sbr.rel (%p152) target = $region24
    $region23: #{compute_map_2d.1} parent=5 // pred_region
      // Predicated region
      $region25: #{compute_map_2d.1} parent=23 // pred_check
        %p155 = pneg %p30
      $region26: #{compute_map_2d.1} parent=23 // pred_check_branch
        %157 = sbr.rel (%p155) target = $region28
      $region27: #{compute_map_2d.1} parent=23 // pred_region
        %p158 = scmp.lt.s32.totalorder %s10, 2
        %s159 = scalar_select %p158, %s10, 2
        %s160 = smul.addr %s159, 8
        %s161 = smul.addr %s160, 8
        %s162 = scalar_lea.vmem %s0, %s161
      $region28: #{compute_map_2d.1} parent=23 // pred_fallthru
        _
      // Predicated region
      $region29: #{compute_map_2d.1} parent=23 // pred_check
        %p163 = pneg %p56
      $region30: #{compute_map_2d.1} parent=23 // pred_check_branch
        %165 = sbr.rel (%p163) target = $region32
      $region31: #{compute_map_2d.1} parent=23 // pred_region
        %p166 = scmp.lt.s32.totalorder %s10, 2
        %s167 = scalar_select %p166, %s10, 2
        %s168 = smul.addr %s167, 4
        %s169 = scalar_lea.vmem %s1, %s168
      $region32: #{compute_map_2d.1} parent=23 // pred_fallthru
        _
    $region24: #{compute_map_2d.1} parent=5 // pred_fallthru
      _
    %p170 = scmp.le.s32.totalorder 1, %s10
    %p171 = scmp.lt.s32.totalorder %s10, 4
    %p172 = pnand %p170, %p171
    %p173 = pneg %p172
    // Predicated region
    $region33: #{compute_map_2d.1} parent=5 // pred_check
      _
    $region34: #{compute_map_2d.1} parent=5 // pred_check_branch
      %175 = sbr.rel (%p172) target = $region36
    $region35: #{compute_map_2d.1} parent=5 // pred_region
      %s176 = ssub.s32 %s10, 1
      %p177 = scmp.lt.s32.totalorder %s15, 2
      %s178 = scalar_select %p177, %s15, 2
      %s179 = smul.addr %s178, 8
      %s180 = smul.addr %s179, 8
      %s181 = scalar_lea.vmem %s0, %s180
      %p182 = pneg %p36
      %p183 = pneg %p33
      %p184 = scmp.lt.s32.totalorder %s15, 2
      %s185 = scalar_select %p184, %s15, 2
      %s186 = smul.addr %s185, 4
      %s187 = scalar_lea.vmem %s1, %s186
      %p188 = pneg %p62
      %p189 = pneg %p59
      %p190 = pneg %p83
      %p191 = pneg %p80
      %p192 = pneg %p104
      %p193 = pneg %p101
      %p194 = pneg %p130
      %p195 = pneg %p127
      %p196 = scmp.lt.s32.totalorder %s15, 2
      %s197 = scalar_select %p196, %s15, 2
      %s198 = smul.addr %s197, 8
      %s199 = smul.addr %s198, 8
      %s200 = scalar_lea.vmem %s4, %s199
      %p201 = scmp.lt.s32.totalorder %s15, 2
      %s202 = scalar_select %p201, %s15, 2
      %s203 = smul.addr %s202, 8
      %s204 = smul.addr %s203, 8
      %s205 = scalar_lea.vmem %s0, %s204
      %p206 = scmp.lt.s32.totalorder %s15, 2
      %s207 = scalar_select %p206, %s15, 2
      %s208 = smul.addr %s207, 4
      %s209 = scalar_lea.vmem %s1, %s208
      %p210 = scmp.lt.s32.totalorder %s15, 2
      %s211 = scalar_select %p210, %s15, 2
      %s212 = smul.addr %s211, 8
      %s213 = smul.addr %s212, 8
      %s214 = scalar_lea.vmem %s4, %s213
      %v215 = vld [vmem:[%s205] sm:$0xff]
      %v216 = vld [vmem:[%s205 + $0x8] sm:$0xff]
      %v217 = vld [vmem:[%s205 + $0x10] sm:$0xff]
      %v218 = vld [vmem:[%s205 + $0x18] sm:$0xff]
      %v219 = vld [vmem:[%s205 + $0x20] sm:$0xff]
      %v220 = vld [vmem:[%s205 + $0x28] sm:$0xff]
      %v221 = vld [vmem:[%s205 + $0x30] sm:$0xff]
      %v222 = vld [vmem:[%s205 + $0x38] sm:$0xff]
      %v223 = vld [vmem:[%s209] sm:$0x1]
      %v224 = vld [vmem:[%s209 + $0x1] sm:$0x1]
      %v225 = vld [vmem:[%s209 + $0x2] sm:$0x1]
      %v226 = vld [vmem:[%s209 + $0x3] sm:$0x1]
      %228 = vset.pattern.permute.xlu0 0
      %229 = vperm.xlu0 %228, %v215
      %v230 = vpop.permute.xlu0 %229
      %233 = vset.pattern.permute.xlu0 0
      %234 = vperm.xlu0 %233, %v216
      %v235 = vpop.permute.xlu0 %234
      %238 = vset.pattern.permute.xlu0 0
      %239 = vperm.xlu0 %238, %v217
      %v240 = vpop.permute.xlu0 %239
      %243 = vset.pattern.permute.xlu0 0
      %244 = vperm.xlu0 %243, %v218
      %v245 = vpop.permute.xlu0 %244
      %248 = vset.pattern.permute.xlu0 0
      %249 = vperm.xlu0 %248, %v219
      %v250 = vpop.permute.xlu0 %249
      %253 = vset.pattern.permute.xlu0 0
      %254 = vperm.xlu0 %253, %v220
      %v255 = vpop.permute.xlu0 %254
      %258 = vset.pattern.permute.xlu0 0
      %259 = vperm.xlu0 %258, %v221
      %v260 = vpop.permute.xlu0 %259
      %263 = vset.pattern.permute.xlu0 0
      %264 = vperm.xlu0 %263, %v222
      %v265 = vpop.permute.xlu0 %264
      %v267 = vperm.slane %v223, 0
      %v268 = vmax.f32 %v230, %v267
      %v269 = vmax.f32 %v235, %v267
      %v270 = vmax.f32 %v240, %v267
      %v271 = vmax.f32 %v245, %v267
      %v272 = vmax.f32 %v250, %v267
      %v273 = vmax.f32 %v255, %v267
      %v274 = vmax.f32 %v260, %v267
      %v275 = vmax.f32 %v265, %v267
      %276 = vset.pattern.permute.xlu0 1
      %277 = vperm.xlu0 %276, %v215
      %v278 = vpop.permute.xlu0 %277
      %280 = vset.pattern.permute.xlu0 1
      %281 = vperm.xlu0 %280, %v216
      %v282 = vpop.permute.xlu0 %281
      %284 = vset.pattern.permute.xlu0 1
      %285 = vperm.xlu0 %284, %v217
      %v286 = vpop.permute.xlu0 %285
      %288 = vset.pattern.permute.xlu0 1
      %289 = vperm.xlu0 %288, %v218
      %v290 = vpop.permute.xlu0 %289
      %292 = vset.pattern.permute.xlu0 1
      %293 = vperm.xlu0 %292, %v219
      %v294 = vpop.permute.xlu0 %293
      %296 = vset.pattern.permute.xlu0 1
      %297 = vperm.xlu0 %296, %v220
      %v298 = vpop.permute.xlu0 %297
      %300 = vset.pattern.permute.xlu0 1
      %301 = vperm.xlu0 %300, %v221
      %v302 = vpop.permute.xlu0 %301
      %304 = vset.pattern.permute.xlu0 1
      %305 = vperm.xlu0 %304, %v222
      %v306 = vpop.permute.xlu0 %305
      %v308 = vperm.slane %v224, 0
      %v309 = vmax.f32 %v278, %v308
      %v310 = vmax.f32 %v282, %v308
      %v311 = vmax.f32 %v286, %v308
      %v312 = vmax.f32 %v290, %v308
      %v313 = vmax.f32 %v294, %v308
      %v314 = vmax.f32 %v298, %v308
      %v315 = vmax.f32 %v302, %v308
      %v316 = vmax.f32 %v306, %v308
      %317 = vset.pattern.permute.xlu0 2
      %318 = vperm.xlu0 %317, %v215
      %v319 = vpop.permute.xlu0 %318
      %321 = vset.pattern.permute.xlu0 2
      %322 = vperm.xlu0 %321, %v216
      %v323 = vpop.permute.xlu0 %322
      %325 = vset.pattern.permute.xlu0 2
      %326 = vperm.xlu0 %325, %v217
      %v327 = vpop.permute.xlu0 %326
      %329 = vset.pattern.permute.xlu0 2
      %330 = vperm.xlu0 %329, %v218
      %v331 = vpop.permute.xlu0 %330
      %333 = vset.pattern.permute.xlu0 2
      %334 = vperm.xlu0 %333, %v219
      %v335 = vpop.permute.xlu0 %334
      %337 = vset.pattern.permute.xlu0 2
      %338 = vperm.xlu0 %337, %v220
      %v339 = vpop.permute.xlu0 %338
      %341 = vset.pattern.permute.xlu0 2
      %342 = vperm.xlu0 %341, %v221
      %v343 = vpop.permute.xlu0 %342
      %345 = vset.pattern.permute.xlu0 2
      %346 = vperm.xlu0 %345, %v222
      %v347 = vpop.permute.xlu0 %346
      %v349 = vperm.slane %v225, 0
      %v350 = vmin.f32 %v319, %v349
      %v351 = vmin.f32 %v323, %v349
      %v352 = vmin.f32 %v327, %v349
      %v353 = vmin.f32 %v331, %v349
      %v354 = vmin.f32 %v335, %v349
      %v355 = vmin.f32 %v339, %v349
      %v356 = vmin.f32 %v343, %v349
      %v357 = vmin.f32 %v347, %v349
      %358 = vset.pattern.permute.xlu0 3
      %359 = vperm.xlu0 %358, %v215
      %v360 = vpop.permute.xlu0 %359
      %362 = vset.pattern.permute.xlu0 3
      %363 = vperm.xlu0 %362, %v216
      %v364 = vpop.permute.xlu0 %363
      %366 = vset.pattern.permute.xlu0 3
      %367 = vperm.xlu0 %366, %v217
      %v368 = vpop.permute.xlu0 %367
      %370 = vset.pattern.permute.xlu0 3
      %371 = vperm.xlu0 %370, %v218
      %v372 = vpop.permute.xlu0 %371
      %374 = vset.pattern.permute.xlu0 3
      %375 = vperm.xlu0 %374, %v219
      %v376 = vpop.permute.xlu0 %375
      %378 = vset.pattern.permute.xlu0 3
      %379 = vperm.xlu0 %378, %v220
      %v380 = vpop.permute.xlu0 %379
      %382 = vset.pattern.permute.xlu0 3
      %383 = vperm.xlu0 %382, %v221
      %v384 = vpop.permute.xlu0 %383
      %386 = vset.pattern.permute.xlu0 3
      %387 = vperm.xlu0 %386, %v222
      %v388 = vpop.permute.xlu0 %387
      %v390 = vperm.slane %v226, 0
      %v391 = vmin.f32 %v360, %v390
      %v392 = vmin.f32 %v364, %v390
      %v393 = vmin.f32 %v368, %v390
      %v394 = vmin.f32 %v372, %v390
      %v395 = vmin.f32 %v376, %v390
      %v396 = vmin.f32 %v380, %v390
      %v397 = vmin.f32 %v384, %v390
      %v398 = vmin.f32 %v388, %v390
      %v399 = vsub.f32 %v350, %v268
      %v400 = vsub.f32 %v351, %v269
      %v401 = vsub.f32 %v352, %v270
      %v402 = vsub.f32 %v353, %v271
      %v403 = vsub.f32 %v354, %v272
      %v404 = vsub.f32 %v355, %v273
      %v405 = vsub.f32 %v356, %v274
      %v406 = vsub.f32 %v357, %v275
      %v407 = vmax.f32 %v399, 0.0
      %v408 = vmax.f32 %v400, 0.0
      %v409 = vmax.f32 %v401, 0.0
      %v410 = vmax.f32 %v402, 0.0
      %v411 = vmax.f32 %v403, 0.0
      %v412 = vmax.f32 %v404, 0.0
      %v413 = vmax.f32 %v405, 0.0
      %v414 = vmax.f32 %v406, 0.0
      %v415 = vsub.f32 %v391, %v309
      %v416 = vsub.f32 %v392, %v310
      %v417 = vsub.f32 %v393, %v311
      %v418 = vsub.f32 %v394, %v312
      %v419 = vsub.f32 %v395, %v313
      %v420 = vsub.f32 %v396, %v314
      %v421 = vsub.f32 %v397, %v315
      %v422 = vsub.f32 %v398, %v316
      %v423 = vmax.f32 %v415, 0.0
      %v424 = vmax.f32 %v416, 0.0
      %v425 = vmax.f32 %v417, 0.0
      %v426 = vmax.f32 %v418, 0.0
      %v427 = vmax.f32 %v419, 0.0
      %v428 = vmax.f32 %v420, 0.0
      %v429 = vmax.f32 %v421, 0.0
      %v430 = vmax.f32 %v422, 0.0
      %v431 = vmul.f32 %v407, %v423
      %v432 = vmul.f32 %v408, %v424
      %v433 = vmul.f32 %v409, %v425
      %v434 = vmul.f32 %v410, %v426
      %v435 = vmul.f32 %v411, %v427
      %v436 = vmul.f32 %v412, %v428
      %v437 = vmul.f32 %v413, %v429
      %v438 = vmul.f32 %v414, %v430
      %439 = vrot.lane.b32.xlu0 %v215, 2
      %v440 = vpop.permute.xlu0 %439
      %441 = vrot.lane.b32.xlu0 %v216, 2
      %v442 = vpop.permute.xlu0 %441
      %443 = vrot.lane.b32.xlu0 %v217, 2
      %v444 = vpop.permute.xlu0 %443
      %445 = vrot.lane.b32.xlu0 %v218, 2
      %v446 = vpop.permute.xlu0 %445
      %447 = vrot.lane.b32.xlu0 %v219, 2
      %v448 = vpop.permute.xlu0 %447
      %449 = vrot.lane.b32.xlu0 %v220, 2
      %v450 = vpop.permute.xlu0 %449
      %451 = vrot.lane.b32.xlu0 %v221, 2
      %v452 = vpop.permute.xlu0 %451
      %453 = vrot.lane.b32.xlu0 %v222, 2
      %v454 = vpop.permute.xlu0 %453
      %v463 = vsub.f32 %v215, %v440
      %v464 = vsub.f32 %v216, %v442
      %v465 = vsub.f32 %v217, %v444
      %v466 = vsub.f32 %v218, %v446
      %v467 = vsub.f32 %v219, %v448
      %v468 = vsub.f32 %v220, %v450
      %v469 = vsub.f32 %v221, %v452
      %v470 = vsub.f32 %v222, %v454
      %v471 = vmax.f32 %v463, 0.0
      %v472 = vmax.f32 %v464, 0.0
      %v473 = vmax.f32 %v465, 0.0
      %v474 = vmax.f32 %v466, 0.0
      %v475 = vmax.f32 %v467, 0.0
      %v476 = vmax.f32 %v468, 0.0
      %v477 = vmax.f32 %v469, 0.0
      %v478 = vmax.f32 %v470, 0.0
      %487 = vrot.lane.b32.xlu0 %v471, 127
      %v488 = vpop.permute.xlu0 %487
      %489 = vrot.lane.b32.xlu0 %v472, 127
      %v490 = vpop.permute.xlu0 %489
      %491 = vrot.lane.b32.xlu0 %v473, 127
      %v492 = vpop.permute.xlu0 %491
      %493 = vrot.lane.b32.xlu0 %v474, 127
      %v494 = vpop.permute.xlu0 %493
      %495 = vrot.lane.b32.xlu0 %v475, 127
      %v496 = vpop.permute.xlu0 %495
      %497 = vrot.lane.b32.xlu0 %v476, 127
      %v498 = vpop.permute.xlu0 %497
      %499 = vrot.lane.b32.xlu0 %v477, 127
      %v500 = vpop.permute.xlu0 %499
      %501 = vrot.lane.b32.xlu0 %v478, 127
      %v502 = vpop.permute.xlu0 %501
      %v511 = vmul.f32 %v471, %v488
      %v512 = vmul.f32 %v472, %v490
      %v513 = vmul.f32 %v473, %v492
      %v514 = vmul.f32 %v474, %v494
      %v515 = vmul.f32 %v475, %v496
      %v516 = vmul.f32 %v476, %v498
      %v517 = vmul.f32 %v477, %v500
      %v518 = vmul.f32 %v478, %v502
      %v519 = vsub.f32 %v225, %v223
      %v520 = vmax.f32 %v519, 0.0
      %v521 = vsub.f32 %v226, %v224
      %v522 = vmax.f32 %v521, 0.0
      %v523 = vmul.f32 %v520, %v522
      %525 = vset.pattern.permute.xlu0 2
      %526 = vperm.xlu0 %525, %v511
      %v527 = vpop.permute.xlu0 %526
      %530 = vset.pattern.permute.xlu0 2
      %531 = vperm.xlu0 %530, %v512
      %v532 = vpop.permute.xlu0 %531
      %535 = vset.pattern.permute.xlu0 2
      %536 = vperm.xlu0 %535, %v513
      %v537 = vpop.permute.xlu0 %536
      %540 = vset.pattern.permute.xlu0 2
      %541 = vperm.xlu0 %540, %v514
      %v542 = vpop.permute.xlu0 %541
      %545 = vset.pattern.permute.xlu0 2
      %546 = vperm.xlu0 %545, %v515
      %v547 = vpop.permute.xlu0 %546
      %550 = vset.pattern.permute.xlu0 2
      %551 = vperm.xlu0 %550, %v516
      %v552 = vpop.permute.xlu0 %551
      %555 = vset.pattern.permute.xlu0 2
      %556 = vperm.xlu0 %555, %v517
      %v557 = vpop.permute.xlu0 %556
      %560 = vset.pattern.permute.xlu0 2
      %561 = vperm.xlu0 %560, %v518
      %v562 = vpop.permute.xlu0 %561
      %v564 = vperm.slane %v523, 0
      %v565 = vadd.f32 %v527, %v564
      %v566 = vadd.f32 %v532, %v564
      %v567 = vadd.f32 %v537, %v564
      %v568 = vadd.f32 %v542, %v564
      %v569 = vadd.f32 %v547, %v564
      %v570 = vadd.f32 %v552, %v564
      %v571 = vadd.f32 %v557, %v564
      %v572 = vadd.f32 %v562, %v564
      %v573 = vsub.f32 %v565, %v431
      %v574 = vsub.f32 %v566, %v432
      %v575 = vsub.f32 %v567, %v433
      %v576 = vsub.f32 %v568, %v434
      %v577 = vsub.f32 %v569, %v435
      %v578 = vsub.f32 %v570, %v436
      %v579 = vsub.f32 %v571, %v437
      %v580 = vsub.f32 %v572, %v438
      %v581 = vmax.f32 %v573, 1e-09
      %v582 = vmax.f32 %v574, 1e-09
      %v583 = vmax.f32 %v575, 1e-09
      %v584 = vmax.f32 %v576, 1e-09
      %v585 = vmax.f32 %v577, 1e-09
      %v586 = vmax.f32 %v578, 1e-09
      %v587 = vmax.f32 %v579, 1e-09
      %v588 = vmax.f32 %v580, 1e-09
      %v589 = vrcp.pop %v581
      %v590 = vrcp.pop %v582
      %v591 = vrcp.pop %v583
      %v592 = vrcp.pop %v584
      %v593 = vrcp.pop %v585
      %v594 = vrcp.pop %v586
      %v595 = vrcp.pop %v587
      %v596 = vrcp.pop %v588
      %v597 = vmul.f32 %v431, %v589
      %v598 = vmul.f32 %v432, %v590
      %v599 = vmul.f32 %v433, %v591
      %v600 = vmul.f32 %v434, %v592
      %v601 = vmul.f32 %v435, %v593
      %v602 = vmul.f32 %v436, %v594
      %v603 = vmul.f32 %v437, %v595
      %v604 = vmul.f32 %v438, %v596
      %v605 = vld [vmem:[%s2] sm:$0xff]
      %v606 = vld [vmem:[%s2 + $0x8] sm:$0xff]
      %v607 = vld [vmem:[%s2 + $0x10] sm:$0xff]
      %v608 = vld [vmem:[%s2 + $0x18] sm:$0xff]
      %v609 = vld [vmem:[%s2 + $0x20] sm:$0xff]
      %v610 = vld [vmem:[%s2 + $0x28] sm:$0xff]
      %v611 = vld [vmem:[%s2 + $0x30] sm:$0xff]
      %v612 = vld [vmem:[%s2 + $0x38] sm:$0xff]
      %v613 = vld [vmem:[%s3] sm:$0x1]
      %614 = vset.pattern.permute.xlu0 0
      %615 = vperm.xlu0 %614, %v605
      %v616 = vpop.permute.xlu0 %615
      %617 = vset.pattern.permute.xlu0 0
      %618 = vperm.xlu0 %617, %v606
      %v619 = vpop.permute.xlu0 %618
      %620 = vset.pattern.permute.xlu0 0
      %621 = vperm.xlu0 %620, %v607
      %v622 = vpop.permute.xlu0 %621
      %623 = vset.pattern.permute.xlu0 0
      %624 = vperm.xlu0 %623, %v608
      %v625 = vpop.permute.xlu0 %624
      %626 = vset.pattern.permute.xlu0 0
      %627 = vperm.xlu0 %626, %v609
      %v628 = vpop.permute.xlu0 %627
      %629 = vset.pattern.permute.xlu0 0
      %630 = vperm.xlu0 %629, %v610
      %v631 = vpop.permute.xlu0 %630
      %632 = vset.pattern.permute.xlu0 0
      %633 = vperm.xlu0 %632, %v611
      %v634 = vpop.permute.xlu0 %633
      %635 = vset.pattern.permute.xlu0 0
      %636 = vperm.xlu0 %635, %v612
      %v637 = vpop.permute.xlu0 %636
      %v638 = vperm.slane %v613, 0
      %vm639 = vcmp.eq.s32.totalorder %v616, %v638
      %vm640 = vcmp.eq.s32.totalorder %v619, %v638
      %vm641 = vcmp.eq.s32.totalorder %v622, %v638
      %vm642 = vcmp.eq.s32.totalorder %v625, %v638
      %vm643 = vcmp.eq.s32.totalorder %v628, %v638
      %vm644 = vcmp.eq.s32.totalorder %v631, %v638
      %vm645 = vcmp.eq.s32.totalorder %v634, %v638
      %vm646 = vcmp.eq.s32.totalorder %v637, %v638
      %vm647 = vcmp.ge.s32.totalorder %v605, 0
      %vm648 = vcmp.ge.s32.totalorder %v606, 0
      %vm649 = vcmp.ge.s32.totalorder %v607, 0
      %vm650 = vcmp.ge.s32.totalorder %v608, 0
      %vm651 = vcmp.ge.s32.totalorder %v609, 0
      %vm652 = vcmp.ge.s32.totalorder %v610, 0
      %vm653 = vcmp.ge.s32.totalorder %v611, 0
      %vm654 = vcmp.ge.s32.totalorder %v612, 0
      %v655 = vsel %vm647, 1, 0
      %v656 = vsel %vm648, 1, 0
      %v657 = vsel %vm649, 1, 0
      %v658 = vsel %vm650, 1, 0
      %v659 = vsel %vm651, 1, 0
      %v660 = vsel %vm652, 1, 0
      %v661 = vsel %vm653, 1, 0
      %v662 = vsel %vm654, 1, 0
      %663 = vset.pattern.permute.xlu0 0
      %664 = vperm.xlu0 %663, %v655
      %v665 = vpop.permute.xlu0 %664
      %666 = vset.pattern.permute.xlu0 0
      %667 = vperm.xlu0 %666, %v656
      %v668 = vpop.permute.xlu0 %667
      %669 = vset.pattern.permute.xlu0 0
      %670 = vperm.xlu0 %669, %v657
      %v671 = vpop.permute.xlu0 %670
      %672 = vset.pattern.permute.xlu0 0
      %673 = vperm.xlu0 %672, %v658
      %v674 = vpop.permute.xlu0 %673
      %675 = vset.pattern.permute.xlu0 0
      %676 = vperm.xlu0 %675, %v659
      %v677 = vpop.permute.xlu0 %676
      %678 = vset.pattern.permute.xlu0 0
      %679 = vperm.xlu0 %678, %v660
      %v680 = vpop.permute.xlu0 %679
      %681 = vset.pattern.permute.xlu0 0
      %682 = vperm.xlu0 %681, %v661
      %v683 = vpop.permute.xlu0 %682
      %684 = vset.pattern.permute.xlu0 0
      %685 = vperm.xlu0 %684, %v662
      %v686 = vpop.permute.xlu0 %685
      %vm687 = vcmp.eq.s32.totalorder %v665, 1
      %vm688 = vcmp.eq.s32.totalorder %v668, 1
      %vm689 = vcmp.eq.s32.totalorder %v671, 1
      %vm690 = vcmp.eq.s32.totalorder %v674, 1
      %vm691 = vcmp.eq.s32.totalorder %v677, 1
      %vm692 = vcmp.eq.s32.totalorder %v680, 1
      %vm693 = vcmp.eq.s32.totalorder %v683, 1
      %vm694 = vcmp.eq.s32.totalorder %v686, 1
      %vm695 = vmand %vm639, %vm687
      %vm696 = vmand %vm640, %vm688
      %vm697 = vmand %vm641, %vm689
      %vm698 = vmand %vm642, %vm690
      %vm699 = vmand %vm643, %vm691
      %vm700 = vmand %vm644, %vm692
      %vm701 = vmand %vm645, %vm693
      %vm702 = vmand %vm646, %vm694
      %vm703 = vcmp.ge.s32.totalorder %v613, 0
      %v704 = vsel %vm703, 1, 0
      %v705 = vperm.slane %v704, 0
      %vm706 = vcmp.eq.s32.totalorder %v705, 1
      %vm707 = vmand %vm695, %vm706
      %vm708 = vmand %vm696, %vm706
      %vm709 = vmand %vm697, %vm706
      %vm710 = vmand %vm698, %vm706
      %vm711 = vmand %vm699, %vm706
      %vm712 = vmand %vm700, %vm706
      %vm713 = vmand %vm701, %vm706
      %vm714 = vmand %vm702, %vm706
      %v715 = vsel %vm707, %v597, 0.0
      %v716 = vsel %vm708, %v598, 0.0
      %v717 = vsel %vm709, %v599, 0.0
      %v718 = vsel %vm710, %v600, 0.0
      %v719 = vsel %vm711, %v601, 0.0
      %v720 = vsel %vm712, %v602, 0.0
      %v721 = vsel %vm713, %v603, 0.0
      %v722 = vsel %vm714, %v604, 0.0
      %723 = vst [vmem:[%s214] sm:$0xff] %v715
      %724 = vst [vmem:[%s214 + $0x8] sm:$0xff] %v716
      %725 = vst [vmem:[%s214 + $0x10] sm:$0xff] %v717
      %726 = vst [vmem:[%s214 + $0x18] sm:$0xff] %v718
      %727 = vst [vmem:[%s214 + $0x20] sm:$0xff] %v719
      %728 = vst [vmem:[%s214 + $0x28] sm:$0xff] %v720
      %729 = vst [vmem:[%s214 + $0x30] sm:$0xff] %v721
      %730 = vst [vmem:[%s214 + $0x38] sm:$0xff] %v722
      %p731 = scmp.lt.s32.totalorder %s15, 2
      %s732 = scalar_select %p731, %s15, 2
      %s733 = smul.addr %s732, 8
      %s734 = smul.addr %s733, 8
      %s735 = scalar_lea.vmem %s4, %s734
      // Predicated region
      $region37: #{compute_map_2d.1} parent=35 // pred_check
        %p736 = pneg %p127
      $region38: #{compute_map_2d.1} parent=35 // pred_check_branch
        %738 = sbr.rel (%p736) target = $region40
      $region39: #{compute_map_2d.1} parent=35 // pred_region
        _
      $region40: #{compute_map_2d.1} parent=35 // pred_fallthru
        _
    $region36: #{compute_map_2d.1} parent=5 // pred_fallthru
      _
    %p739 = scmp.le.s32.totalorder 2, %s10
    // Predicated region
    $region41: #{compute_map_2d.1} parent=5 // pred_check
      %p740 = pneg %p739
    $region42: #{compute_map_2d.1} parent=5 // pred_check_branch
      %742 = sbr.rel (%p740) target = $region44
    $region43: #{compute_map_2d.1} parent=5 // pred_region
      %s743 = ssub.s32 %s10, 2
      // Predicated region
      $region45: #{compute_map_2d.1} parent=43 // pred_check
        %p744 = pneg %p133
      $region46: #{compute_map_2d.1} parent=43 // pred_check_branch
        %746 = sbr.rel (%p744) target = $region48
      $region47: #{compute_map_2d.1} parent=43 // pred_region
        %p747 = scmp.lt.s32.totalorder %s16, 2
        %s748 = scalar_select %p747, %s16, 2
        %s749 = smul.addr %s748, 8
        %s750 = smul.addr %s749, 8
        %s751 = scalar_lea.vmem %s4, %s750
      $region48: #{compute_map_2d.1} parent=43 // pred_fallthru
        _
    $region44: #{compute_map_2d.1} parent=5 // pred_fallthru
      _
  $region6: #{compute_map_2d.1} parent=0 // loop_footer
    %s14 = sadd.s32 1, %s10
  $region7: #{compute_map_2d.1} parent=0 // loop_footer_branch
    %9 = sbr.rel target = $region3
  $region8: #{compute_map_2d.1} parent=0 // loop_exit
    _

</llo_original>
